<compile_context>
chip_gen: v7x
topology: tpu7x:2x2x1
jax: 0.10.0
libtpu: 0.0.40
codegen_flags: <defaults>
</compile_context>

<pallas_src>
import jax
import jax.numpy as jnp
from jax.experimental import pallas as pl
from jax.experimental.pallas import tpu as pltpu

BN_EPS = 1e-5
LANE = 128


def _linear_gating_kernel(x_ref, wc_ref, g_ref, be_ref, o_ref):
    """One output-feature tile: fused dual-branch linear + BN + sigmoid gating.

    wc_ref / g_ref / be_ref hold [branch1 tile | branch2 tile] lane-concatenated,
    so a single MXU matmul and a single BN pass cover both branches.
    """
    tn = o_ref.shape[-1]

    x = x_ref[...]                                                  # [B, C_in]
    y = jnp.dot(x, wc_ref[...], preferred_element_type=jnp.float32)  # [B, 2*TN]

    # Training-mode BatchNorm1d: per-feature batch mean / biased variance.
    m = jnp.mean(y, axis=0, keepdims=True)                          # [1, 2*TN]
    c = y - m                                   # reused for variance AND norm
    v = jnp.mean(c * c, axis=0, keepdims=True)
    s = g_ref[...] * jax.lax.rsqrt(v + BN_EPS)  # folded per-feature scale
    z = c * s + be_ref[...]                     # normalized + affine  [B, 2*TN]

    # Gate: sigmoid(branch 1) * branch 2 (activation=None on branch 2).
    o_ref[...] = jax.nn.sigmoid(z[:, :tn]) * z[:, tn:]


def linear_gating_block(x, params, *, tile_n=None, matmul_dtype=None):
    """x: [B, C_in] float32. params: dict with w1,b1,g1,be1,w2,b2,g2,be2.

    b1/b2 are accepted but intentionally unused: training-mode BN cancels a
    per-feature constant bias exactly.
    """
    B, c_in = x.shape
    c_out = params["w1"].shape[0]

    # Pad output features to a lane multiple so stores are full-width.
    c_pad = ((c_out + LANE - 1) // LANE) * LANE
    if tile_n is None:
        # Largest lane-multiple tile up to 512; for very large shapes shrink so
        # the resident x + 2-deep buffered weight/output blocks stay well inside
        # v7x's 64 MiB VMEM. At toy sizes this is a single 128-wide tile.
        tile_n = min(c_pad, 512)
    assert tile_n % LANE == 0 and c_pad % tile_n == 0
    n_tiles = c_pad // tile_n

    def pad_cols(a, fill=0.0):
        pad = c_pad - c_out
        if pad == 0:
            return a
        return jnp.pad(a, [(0, 0)] * (a.ndim - 1) + [(0, pad)],
                       constant_values=fill)

    # Pre-transpose weights to [C_in, C_out], pad, and interleave per output
    # tile as [... | w1 tile j | w2 tile j | ...] so each grid step sees one
    # contiguous [C_in, 2*tile_n] block -> a single fused MXU matmul.
    w1t = pad_cols(params["w1"].T.astype(jnp.float32))
    w2t = pad_cols(params["w2"].T.astype(jnp.float32))
    wc = jnp.stack(
        [w1t.reshape(c_in, n_tiles, tile_n),
         w2t.reshape(c_in, n_tiles, tile_n)], axis=2
    ).reshape(c_in, n_tiles * 2 * tile_n)

    def cat_vec(a1, a2, fill1, fill2):
        a1 = pad_cols(a1.reshape(1, c_out).astype(jnp.float32), fill1)
        a2 = pad_cols(a2.reshape(1, c_out).astype(jnp.float32), fill2)
        return jnp.stack(
            [a1.reshape(1, n_tiles, tile_n),
             a2.reshape(1, n_tiles, tile_n)], axis=2
        ).reshape(1, n_tiles * 2 * tile_n)

    # Padded branch-2 gamma/beta are zero so padded output features are exactly
    # 0 and get sliced away below (padded weights are zero -> no NaNs in BN).
    gc = cat_vec(params["g1"], params["g2"], 1.0, 0.0)
    bec = cat_vec(params["be1"], params["be2"], 0.0, 0.0)

    if matmul_dtype is not None:
        # Optional bf16 MXU path for large shapes on v6e/v7x; accumulation and
        # all BN / sigmoid math stay f32.
        x = x.astype(matmul_dtype)
        wc = wc.astype(matmul_dtype)

    out = pl.pallas_call(
        _linear_gating_kernel,
        out_shape=jax.ShapeDtypeStruct((B, c_pad), jnp.float32),
        grid_spec=pltpu.PrefetchScalarGridSpec(
            num_scalar_prefetch=0,
            grid=(n_tiles,),
            in_specs=[
                pl.BlockSpec((B, c_in), lambda j: (0, 0)),          # x resident
                pl.BlockSpec((c_in, 2 * tile_n), lambda j: (0, j)),  # weights
                pl.BlockSpec((1, 2 * tile_n), lambda j: (0, j)),     # gamma
                pl.BlockSpec((1, 2 * tile_n), lambda j: (0, j)),     # beta
            ],
            out_specs=pl.BlockSpec((B, tile_n), lambda j: (0, j)),
        ),
        compiler_params=pltpu.CompilerParams(
            # Feature tiles are independent -> shard across v7x's 2 TensorCores.
            dimension_semantics=("parallel",),
        ),
    )(x, wc, gc, bec)

    return out[:, :c_out] if c_pad != c_out else out


def reference(x, params):
    """Pure-JAX reference of the PyTorch forward (training-mode BN, with bias)."""
    def bn(y, g, be):
        m = jnp.mean(y, axis=0, keepdims=True)
        v = jnp.mean((y - m) ** 2, axis=0, keepdims=True)
        return (y - m) / jnp.sqrt(v + BN_EPS) * g + be

    out1 = x @ params["w1"].T + params["b1"]
    out1 = jax.nn.sigmoid(bn(out1, params["g1"], params["be1"]))
    out2 = x @ params["w2"].T + params["b2"]
    out2 = bn(out2, params["g2"], params["be2"])
    return out1 * out2


def _make_inputs(key, B, c_in, c_out):
    kx, k1, k2, k3, k4, k5, k6, k7, k8 = jax.random.split(key, 9)
    x = jax.random.normal(kx, (B, c_in), dtype=jnp.float32)
    bound = 1.0 / (c_in ** 0.5)
    params = {
        "w1": jax.random.uniform(k1, (c_out, c_in), jnp.float32, -bound, bound),
        "b1": jax.random.uniform(k2, (c_out,), jnp.float32, -bound, bound),
        "w2": jax.random.uniform(k3, (c_out, c_in), jnp.float32, -bound, bound),
        "b2": jax.random.uniform(k4, (c_out,), jnp.float32, -bound, bound),
        # Non-trivial BN affine params to exercise the folded scale/shift.
        "g1": jax.random.uniform(k5, (c_out,), jnp.float32, 0.5, 1.5),
        "be1": jax.random.uniform(k6, (c_out,), jnp.float32, -0.5, 0.5),
        "g2": jax.random.uniform(k7, (c_out,), jnp.float32, 0.5, 1.5),
        "be2": jax.random.uniform(k8, (c_out,), jnp.float32, -0.5, 0.5),
    }
    return x, params


if __name__ == "__main__":
    key = jax.random.PRNGKey(0)
    k_a, k_b = jax.random.split(key)

    # Case 1: module-scale toy shape (single 128-wide padded tile).
    x, params = _make_inputs(k_a, 8, 32, 32)
    out = jax.block_until_ready(linear_gating_block(x, params))
    ref = reference(x, params)
    assert out.shape == (8, 32)
    assert jnp.allclose(out, ref, atol=1e-4, rtol=1e-4), \
        float(jnp.max(jnp.abs(out - ref)))

    # Case 2: exercises padding (160 -> 256) and a multi-step feature grid.
    x2, params2 = _make_inputs(k_b, 16, 64, 160)
    out2 = jax.block_until_ready(linear_gating_block(x2, params2, tile_n=128))
    ref2 = reference(x2, params2)
    assert out2.shape == (16, 160)
    assert jnp.allclose(out2, ref2, atol=1e-4, rtol=1e-4), \
        float(jnp.max(jnp.abs(out2 - ref2)))

    print("KERNEL_OK")
</pallas_src>

<mosaic_0001>
module attributes {stable_mosaic.version = 11 : i64} {
  func.func @_linear_gating_kernel(%arg0: i32, %arg1: memref<8x32xf32, #tpu.memory_space<vmem>>, %arg2: memref<32x256xf32, #tpu.memory_space<vmem>>, %arg3: memref<1x256xf32, #tpu.memory_space<vmem>>, %arg4: memref<1x256xf32, #tpu.memory_space<vmem>>, %arg5: memref<8x128xf32, #tpu.memory_space<vmem>>) attributes {dimension_semantics = [#tpu.dimension_semantics<parallel>], iteration_bounds = array<i64: 1>, scalar_prefetch = 0 : i64, scratch_operands = 0 : i64, tpu.core_type = #tpu.core_type<tc>, window_params = [{pipeline_mode = #tpu.pipeline_mode<synchronous>, transform_indices = @transform_0, window_bounds = array<i64: 8, 32>}, {transform_indices = @transform_1, window_bounds = array<i64: 32, 256>}, {transform_indices = @transform_2, window_bounds = array<i64: 1, 256>}, {transform_indices = @transform_3, window_bounds = array<i64: 1, 256>}, {transform_indices = @transform_4, window_bounds = array<i64: 8, 128>}]} {
    %c0 = arith.constant 0 : index
    %c0_0 = arith.constant 0 : index
    %0 = vector.load %arg1[%c0, %c0_0] : memref<8x32xf32, #tpu.memory_space<vmem>>, vector<8x32xf32>
    %c0_1 = arith.constant 0 : index
    %c0_2 = arith.constant 0 : index
    %1 = vector.load %arg2[%c0_1, %c0_2] : memref<32x256xf32, #tpu.memory_space<vmem>>, vector<32x256xf32>
    %cst = arith.constant dense<0.000000e+00> : vector<8x256xf32>
    %2 = tpu.matmul %0, %1, %cst {dimension_numbers = #tpu.dot_dimension_numbers<[1], [0], [0], [1], [0, 0, 1, 1], [], []>} : vector<8x32xf32>, vector<32x256xf32>, vector<8x256xf32> -> vector<8x256xf32>
    %cst_3 = arith.constant dense<0.000000e+00> : vector<256xf32>
    %3 = vector.multi_reduction <add>, %2, %cst_3 [0] : vector<8x256xf32> to vector<256xf32>
    %4 = vector.shape_cast %3 : vector<256xf32> to vector<1x256xf32>
    %cst_4 = arith.constant 8.000000e+00 : f32
    %5 = vector.broadcast %cst_4 : f32 to vector<1x256xf32>
    %6 = arith.divf %4, %5 : vector<1x256xf32>
    %7 = vector.broadcast %6 : vector<1x256xf32> to vector<8x256xf32>
    %8 = arith.subf %2, %7 : vector<8x256xf32>
    %9 = arith.mulf %8, %8 : vector<8x256xf32>
    %cst_5 = arith.constant dense<0.000000e+00> : vector<256xf32>
    %10 = vector.multi_reduction <add>, %9, %cst_5 [0] : vector<8x256xf32> to vector<256xf32>
    %11 = vector.shape_cast %10 : vector<256xf32> to vector<1x256xf32>
    %cst_6 = arith.constant 8.000000e+00 : f32
    %12 = vector.broadcast %cst_6 : f32 to vector<1x256xf32>
    %13 = arith.divf %11, %12 : vector<1x256xf32>
    %c0_7 = arith.constant 0 : index
    %c0_8 = arith.constant 0 : index
    %14 = vector.load %arg3[%c0_7, %c0_8] : memref<1x256xf32, #tpu.memory_space<vmem>>, vector<1x256xf32>
    %cst_9 = arith.constant 9.99999974E-6 : f32
    %15 = vector.broadcast %cst_9 : f32 to vector<1x256xf32>
    %16 = arith.addf %13, %15 : vector<1x256xf32>
    %17 = math.rsqrt %16 : vector<1x256xf32>
    %18 = arith.mulf %14, %17 : vector<1x256xf32>
    %19 = vector.broadcast %18 : vector<1x256xf32> to vector<8x256xf32>
    %20 = arith.mulf %8, %19 : vector<8x256xf32>
    %c0_10 = arith.constant 0 : index
    %c0_11 = arith.constant 0 : index
    %21 = vector.load %arg4[%c0_10, %c0_11] : memref<1x256xf32, #tpu.memory_space<vmem>>, vector<1x256xf32>
    %22 = vector.broadcast %21 : vector<1x256xf32> to vector<8x256xf32>
    %23 = arith.addf %20, %22 : vector<8x256xf32>
    %24 = vector.extract_strided_slice %23 {offsets = [0, 0], sizes = [8, 128], strides = [1, 1]} : vector<8x256xf32> to vector<8x128xf32>
    %25 = arith.negf %24 : vector<8x128xf32>
    %26 = math.exp %25 : vector<8x128xf32>
    %cst_12 = arith.constant 1.000000e+00 : f32
    %27 = vector.broadcast %cst_12 : f32 to vector<8x128xf32>
    %28 = arith.addf %27, %26 : vector<8x128xf32>
    %29 = arith.divf %27, %28 : vector<8x128xf32>
    %30 = vector.extract_strided_slice %23 {offsets = [0, 128], sizes = [8, 128], strides = [1, 1]} : vector<8x256xf32> to vector<8x128xf32>
    %31 = arith.mulf %29, %30 : vector<8x128xf32>
    %c0_13 = arith.constant 0 : index
    %c0_14 = arith.constant 0 : index
    %32 = vector.load %arg5[%c0_13, %c0_14] : memref<8x128xf32, #tpu.memory_space<vmem>>, vector<8x128xf32>
    tpu.vector_store %arg5[%c0_13, %c0_14], %31 {strides = array<i32>} : memref<8x128xf32, #tpu.memory_space<vmem>>, vector<8x128xf32>,
    return
  }
  func.func @transform_0(%arg0: i32) -> (i32, i32) {
    %c0_i32 = arith.constant 0 : i32
    %c0_i32_0 = arith.constant 0 : i32
    %c0_i32_1 = arith.constant 0 : i32
    return %c0_i32, %c0_i32_0 : i32, i32
  }
  func.func @transform_1(%arg0: i32) -> (i32, i32) {
    %c0_i32 = arith.constant 0 : i32
    %c0_i32_0 = arith.constant 0 : i32
    return %c0_i32, %arg0 : i32, i32
  }
  func.func @transform_2(%arg0: i32) -> (i32, i32) {
    %c0_i32 = arith.constant 0 : i32
    %c0_i32_0 = arith.constant 0 : i32
    return %c0_i32, %arg0 : i32, i32
  }
  func.func @transform_3(%arg0: i32) -> (i32, i32) {
    %c0_i32 = arith.constant 0 : i32
    %c0_i32_0 = arith.constant 0 : i32
    return %c0_i32, %arg0 : i32, i32
  }
  func.func @transform_4(%arg0: i32) -> (i32, i32) {
    %c0_i32 = arith.constant 0 : i32
    %c0_i32_0 = arith.constant 0 : i32
    return %c0_i32, %arg0 : i32, i32
  }
}

</mosaic_0001>

<llo_original>
// kernel: tpu_custom_call.1
$region0: #{tpu_custom_call.1}
  #allocation0 [shape = 'u32[]', space=smem, size = 0x4, offset = 0x4, fixed_abs, tag = 'smem constant byte address 0x4 - core index']
  #allocation1 [shape = 'u32[144,128]{1,0:T(1,128)}', space=vmem, size = 0x12000, scoped, tag = 'internal scratch']
  %s0 = inlined_call_operand.hbm [shape: f32[8,32], index: 0, kind: input, shape index: {}]
  %s1 = inlined_call_operand.hbm [shape: f32[32,256], index: 1, kind: input, shape index: {}]
  %s2 = inlined_call_operand.vmem [shape: f32[1,256], index: 2, kind: input, shape index: {}]
  %s3 = inlined_call_operand.vmem [shape: f32[1,256], index: 3, kind: input, shape index: {}]
  %s4 = inlined_call_operand.hbm [shape: f32[8,128], index: 4, kind: output, shape index: {}]
  %s5 = sld [smem:[#allocation0]]
  $region34: #{tpu_custom_call.1} parent=0
    _
  %s7 = ssub.s32 1, %s5
  %s8 = scalar_select 0, %s7, %s5
  $region1: #{tpu_custom_call.1} parent=0
    #allocation2 [shape = 'u8[4096]{0}', space=vmem, size = 0x1000, scoped, tag = 'input window, operand 0, single buffered']
    #allocation3 [shape = 's32[1]{0}', space=sflag, size = 0x4, scoped, tag = 'scoped memory for tpu_custom_call.1']
    #allocation4 [shape = 's32[1]{0}', space=sflag, size = 0x4, scoped, tag = 'scoped memory for tpu_custom_call.1']
    #allocation5 [shape = 'u8[32768]{0}', space=vmem, size = 0x8000, scoped, tag = 'input window, operand 1, single buffered']
    #allocation6 [shape = 's32[1]{0}', space=sflag, size = 0x4, scoped, tag = 'scoped memory for tpu_custom_call.1']
    #allocation7 [shape = 'u8[4096]{0}', space=vmem, size = 0x1000, scoped, tag = 'output window, operand 0, single buffered']
    %9 = vsyncpa [#allocation3], 0
    %10 = vsyncpa [#allocation6], 0
    %11 = vsyncpa [#allocation4], 0
    // Predicated region
    $region2: #{tpu_custom_call.1} parent=1 // pred_check
      _
    $region3: #{tpu_custom_call.1} parent=1 // pred_check_branch
      %13 = sbr.rel (0) target = $region5
    $region4: #{tpu_custom_call.1} parent=1 // pred_region
      %s15 = ssub.s32 128, 128
      %16 = vsyncadd [#allocation3], %s15
      %s18 = sshll.u32 [#allocation2], 4
      %s19 = int_to_ptr.vmem [resolvable:$true] %s18
      %21 = dma.hbm_to_vmem [thread:$0]  %s0, 128, %s19, [#allocation3]
    $region5: #{tpu_custom_call.1} parent=1 // pred_fallthru
      _
    // Predicated region
    $region6: #{tpu_custom_call.1} parent=1 // pred_check
      _
    $region7: #{tpu_custom_call.1} parent=1 // pred_check_branch
      %23 = sbr.rel (0) target = $region9
    $region8: #{tpu_custom_call.1} parent=1 // pred_region
      %s25 = ssub.s32 1024, 1024
      %26 = vsyncadd [#allocation6], %s25
      %s27 = sshll.u32 [#allocation5], 4
      %s28 = int_to_ptr.vmem [resolvable:$true] %s27
      %33 = dma.hbm_to_vmem [thread:$0]  %s1, 1024, %s28, [#allocation6], 256, 256, 16
    $region9: #{tpu_custom_call.1} parent=1 // pred_fallthru
      _
    // Predicated region
    $region10: #{tpu_custom_call.1} parent=1 // pred_check
      _
    $region11: #{tpu_custom_call.1} parent=1 // pred_check_branch
      %35 = sbr.rel (0) target = $region13
    $region12: #{tpu_custom_call.1} parent=1 // pred_region
      _
    $region13: #{tpu_custom_call.1} parent=1 // pred_fallthru
      _
    // Predicated region
    $region14: #{tpu_custom_call.1} parent=1 // pred_check
      _
    $region15: #{tpu_custom_call.1} parent=1 // pred_check_branch
      %37 = sbr.rel (0) target = $region17
    $region16: #{tpu_custom_call.1} parent=1 // pred_region
      _
    $region17: #{tpu_custom_call.1} parent=1 // pred_fallthru
      _
    // Predicated region
    $region18: #{tpu_custom_call.1} parent=1 // pred_check
      _
    $region19: #{tpu_custom_call.1} parent=1 // pred_check_branch
      %39 = sbr.rel (0) target = $region21
    $region20: #{tpu_custom_call.1} parent=1 // pred_region
      %40 = dma.done [#allocation3], 128
    $region21: #{tpu_custom_call.1} parent=1 // pred_fallthru
      _
    // Predicated region
    $region22: #{tpu_custom_call.1} parent=1 // pred_check
      _
    $region23: #{tpu_custom_call.1} parent=1 // pred_check_branch
      %42 = sbr.rel (0) target = $region25
    $region24: #{tpu_custom_call.1} parent=1 // pred_region
      %43 = dma.done [#allocation6], 1024
    $region25: #{tpu_custom_call.1} parent=1 // pred_fallthru
      _
    %v44 = vld [vmem:[#allocation2] sm:$0xff]
    %v45 = vld [vmem:[#allocation5] sm:$0xff]
    %v46 = vld [vmem:[#allocation5 + $0x8] sm:$0xff]
    %v47 = vld [vmem:[#allocation5 + $0x10] sm:$0xff]
    %v48 = vld [vmem:[#allocation5 + $0x18] sm:$0xff]
    %v49 = vld [vmem:[#allocation5 + $0x20] sm:$0xff]
    %v50 = vld [vmem:[#allocation5 + $0x28] sm:$0xff]
    %v51 = vld [vmem:[#allocation5 + $0x30] sm:$0xff]
    %v52 = vld [vmem:[#allocation5 + $0x38] sm:$0xff]
    %vm53 = vcmask 261120
    %v55 = vsel %vm53, %v44, 0
    %57 = vmatprep.subr.mxu0 %v46
    %58 = vmatpush1.msra.mxu0 %v45
    %59 = vmatprep.subr.mxu0 %v48
    %60 = vmatpush1.msra.mxu0 %v47
    %61 = vmatprep.subr.mxu0 %v50
    %62 = vmatpush1.msra.mxu0 %v49
    %63 = vmatprep.subr.mxu0 %v52
    %64 = vmatpush1.msra.mxu0 %v51
    %65 = vmatprep.subr.mxu0 0.0
    %66 = vmatpush1.msra.mxu0 0.0
    %67 = vmatprep.subr.mxu0 0.0
    %68 = vmatpush1.msra.mxu0 0.0
    %69 = vmatprep.subr.mxu0 0.0
    %70 = vmatpush1.msra.mxu0 0.0
    %71 = vmatprep.subr.mxu0 0.0
    %72 = vmatpush1.msra.mxu0 0.0
    %73 = vmatprep.subr.mxu0 0.0
    %74 = vmatpush1.msra.mxu0 0.0
    %75 = vmatprep.subr.mxu0 0.0
    %76 = vmatpush1.msra.mxu0 0.0
    %77 = vmatprep.subr.mxu0 0.0
    %78 = vmatpush1.msra.mxu0 0.0
    %79 = vmatprep.subr.mxu0 0.0
    %80 = vmatpush1.msra.mxu0 0.0
    %81 = vmatprep.subr.mxu0 0.0
    %82 = vmatpush1.msra.mxu0 0.0
    %83 = vmatprep.subr.mxu0 0.0
    %84 = vmatpush1.msra.mxu0 0.0
    %85 = vmatprep.subr.mxu0 0.0
    %86 = vmatpush1.msra.mxu0 0.0
    %87 = vmatprep.subr.mxu0 0.0
    %88 = vmatpush1.msra.mxu0 0.0
    %89 = vmatprep.subr.mxu0 0.0
    %90 = vmatpush1.msra.mxu0 0.0
    %91 = vmatprep.subr.mxu0 0.0
    %92 = vmatpush1.msra.mxu0 0.0
    %93 = vmatprep.subr.mxu0 0.0
    %94 = vmatpush1.msra.mxu0 0.0
    %95 = vmatprep.subr.mxu0 0.0
    %96 = vmatpush1.msra.mxu0 0.0
    %97 = vmatprep.subr.mxu0 0.0
    %98 = vmatpush1.msra.mxu0 0.0
    %99 = vmatprep.subr.mxu0 0.0
    %100 = vmatpush1.msra.mxu0 0.0
    %101 = vmatprep.subr.mxu0 0.0
    %102 = vmatpush1.msra.mxu0 0.0
    %103 = vmatprep.subr.mxu0 0.0
    %104 = vmatpush1.msra.mxu0 0.0
    %105 = vmatprep.subr.mxu0 0.0
    %106 = vmatpush1.msra.mxu0 0.0
    %107 = vmatprep.subr.mxu0 0.0
    %108 = vmatpush1.msra.mxu0 0.0
    %109 = vmatprep.subr.mxu0 0.0
    %110 = vmatpush1.msra.mxu0 0.0
    %111 = vmatprep.subr.mxu0 0.0
    %112 = vmatpush1.msra.mxu0 0.0
    %113 = vmatprep.subr.mxu0 0.0
    %114 = vmatpush1.msra.mxu0 0.0
    %115 = vmatprep.subr.mxu0 0.0
    %116 = vmatpush1.msra.mxu0 0.0
    %117 = vmatprep.subr.mxu0 0.0
    %118 = vmatpush1.msra.mxu0 0.0
    %119 = vmatprep.subr.mxu0 0.0
    %120 = vmatpush1.msra.mxu0 0.0
    %121 = vmatprep.mubr.f32.mxu0 0.0
    %122 = vmatmul.mubr.f32.gmra.mrb[0].mxu0 %v55
    %v123 = vpop.f32.mrb[0].mxu0
    %v124 = vadd.f32 0.0, %v123
    %v125 = vpop.f32.mrb[0].mxu0
    %v126 = vadd.f32 0.0, %v125
    %127 = vdwg.mxu0
    %v128 = vrot.slane %v124, 4
    %v129 = vadd.f32 %v124, %v128
    %v130 = vrot.slane %v129, 2
    %v131 = vadd.f32 %v129, %v130
    %v132 = vrot.slane %v131, 1
    %v133 = vadd.f32 %v131, %v132
    %v134 = vrot.slane %v126, 4
    %v135 = vadd.f32 %v126, %v134
    %v136 = vrot.slane %v135, 2
    %v137 = vadd.f32 %v135, %v136
    %v138 = vrot.slane %v137, 1
    %v139 = vadd.f32 %v137, %v138
    %v140 = vrcp.pop 8.0
    %v141 = vmul.f32 %v133, %v140
    %v142 = vmul.f32 %v139, %v140
    %v143 = vsub.f32 %v124, %v141
    %v144 = vsub.f32 %v126, %v142
    %v145 = vmul.f32 %v143, %v143
    %v146 = vmul.f32 %v144, %v144
    %v147 = vrot.slane %v145, 4
    %v148 = vadd.f32 %v145, %v147
    %v149 = vrot.slane %v148, 2
    %v150 = vadd.f32 %v148, %v149
    %v151 = vrot.slane %v150, 1
    %v152 = vadd.f32 %v150, %v151
    %v153 = vrot.slane %v146, 4
    %v154 = vadd.f32 %v146, %v153
    %v155 = vrot.slane %v154, 2
    %v156 = vadd.f32 %v154, %v155
    %v157 = vrot.slane %v156, 1
    %v158 = vadd.f32 %v156, %v157
    %v159 = vmul.f32 %v152, %v140
    %v160 = vmul.f32 %v158, %v140
    %v161 = vld [vmem:[%s2] sm:$0x3]
    %v162 = vadd.f32 %v159, 1e-05
    %v163 = vadd.f32 %v160, 1e-05
    %v164 = vrsqrt.pop %v162
    %v165 = vrsqrt.pop %v163
    %v168 = vcombine.low %v164, %v165
    %v170 = vunpack.c.l.s4 1966171168
    %v171 = vunpack.c.0.s8 %v170
    %v172 = vlaneseq
    %v173 = vshrl.u32 %v172, 7
    %v174 = vsub.s32 %v171, %v173
    %v175 = vrot.slane %v168, %v174
    %v177 = vunpack.c.l.s4 1966171168
    %v178 = vunpack.c.0.s8 %v177
    %v179 = vlaneseq
    %v180 = vshrl.u32 %v179, 7
    %v181 = vsub.s32 %v178, %v180
    %v182 = vrot.slane %v175, %v181
    %v184 = vmul.f32 %v161, %v182
    %v186 = vlaneseq
    %v187 = vshrl.u32 %v186, 7
    %v188 = vsub.s32 0, %v187
    %v189 = vrot.slane %v184, %v188
    %v190 = vlaneseq
    %v191 = vshrl.u32 %v190, 7
    %v192 = vsub.s32 1, %v191
    %v193 = vrot.slane %v184, %v192
    %v196 = vmul.f32 %v143, %v189
    %v197 = vmul.f32 %v144, %v193
    %v198 = vld [vmem:[%s3] sm:$0x3]
    %v200 = vlaneseq
    %v201 = vshrl.u32 %v200, 7
    %v202 = vsub.s32 0, %v201
    %v203 = vrot.slane %v198, %v202
    %v204 = vlaneseq
    %v205 = vshrl.u32 %v204, 7
    %v206 = vsub.s32 1, %v205
    %v207 = vrot.slane %v198, %v206
    %v210 = vadd.f32 %v196, %v203
    %v211 = vadd.f32 %v197, %v207
    %v212 = vxor.u32 %v210, 2147483648
    %v213 = vmul.f32 %v212, 1.442695
    %v214 = vpow.pop %v213
    %v215 = vadd.f32 %v214, 1.0
    %v216 = vrcp.pop %v215
    %v217 = vmul.f32 1.0, %v216
    %v218 = vmul.f32 %v217, %v211
    %219 = vst [vmem:[#allocation7] sm:$0xff] %v218
    // Predicated region
    $region26: #{tpu_custom_call.1} parent=1 // pred_check
      _
    $region27: #{tpu_custom_call.1} parent=1 // pred_check_branch
      %221 = sbr.rel (0) target = $region29
    $region28: #{tpu_custom_call.1} parent=1 // pred_region
      %s223 = ssub.s32 128, 128
      %224 = vsyncadd [#allocation4], %s223
      %s226 = sshll.u32 [#allocation7], 4
      %s227 = int_to_ptr.vmem [resolvable:$true] %s226
      %229 = dma.vmem_to_hbm [thread:$0]  %s227, 128, %s4, [#allocation4]
    $region29: #{tpu_custom_call.1} parent=1 // pred_fallthru
      _
    // Predicated region
    $region30: #{tpu_custom_call.1} parent=1 // pred_check
      _
    $region31: #{tpu_custom_call.1} parent=1 // pred_check_branch
      %231 = sbr.rel (0) target = $region33
    $region32: #{tpu_custom_call.1} parent=1 // pred_region
      %232 = dma.done [#allocation4], 128
    $region33: #{tpu_custom_call.1} parent=1 // pred_fallthru
      _
    %233 = vsyncpa [#allocation3], 1
    %234 = vsyncpa [#allocation6], 1
    %235 = vsyncpa [#allocation4], 1

</llo_original>
